<compile_context>
chip_gen: v5e
topology: v5e:2x2
jax: 0.10.0
libtpu: 0.0.40
codegen_flags: <defaults>
</compile_context>

<pallas_src>
import functools

import jax
import jax.numpy as jnp
from jax.experimental import pallas as pl
from jax.experimental.pallas import tpu as pltpu


def _pooler_kernel(x_ref, w_ref, b_ref, o_ref):
    # x_ref: [tm, H] first-token activations
    # w_ref: [H, H]  dense weight in PyTorch (out, in) layout (NOT transposed)
    # b_ref: [1, H]  dense bias (f32)
    # o_ref: [tm, H] pooled output
    x = x_ref[...].astype(w_ref.dtype)  # bf16 cast only when the weight is bf16
    # y[b, n] = sum_k x[b, k] * w[n, k]  ==  x @ W^T   (PyTorch nn.Linear)
    y = jax.lax.dot_general(
        x, w_ref[...],
        dimension_numbers=(((1,), (1,)), ((), ())),
        preferred_element_type=jnp.float32,
    )
    y = y + b_ref[...].astype(jnp.float32)
    o_ref[...] = jnp.tanh(y).astype(o_ref.dtype)


def bert_pooler(hidden_states, weight, bias, *, block_b=256, use_bf16=False):
    """BertPooler forward.

    hidden_states: [B, S, H]
    weight:        [H, H]  (out_features, in_features) -- PyTorch layout
    bias:          [H]
    """
    B, S, H = hidden_states.shape
    out_dtype = hidden_states.dtype

    # Batch tile: one full-batch block for small B (block == full dim, always
    # layout-legal), else 256-row tiles (multiple of 8 -> sublane aligned);
    # the grid double-buffers activation tiles over a VMEM-resident weight.
    tm = B if B <= block_b else block_b
    grid = (pl.cdiv(B, tm),)

    w = weight.astype(jnp.bfloat16) if use_bf16 else weight
    b2d = bias.reshape(1, H).astype(jnp.float32)

    if H % 128 == 0 or S == 1:
        # Fused first-token slice: view [B, S, H] as [B, S*H] (free, no data
        # movement) and DMA only column block 0 (width H) per batch tile.
        x_in = hidden_states.reshape(B, S * H)
    else:
        # Lane-constraint fallback (H not a multiple of 128): tiny BxH slice
        # outside the kernel.
        x_in = hidden_states[:, 0, :]
    x_spec = pl.BlockSpec((tm, H), lambda i: (i, 0),
                          memory_space=pltpu.MemorySpace.VMEM)

    return pl.pallas_call(
        _pooler_kernel,
        out_shape=jax.ShapeDtypeStruct((B, H), out_dtype),
        grid_spec=pltpu.PrefetchScalarGridSpec(
            num_scalar_prefetch=0,
            grid=grid,
            in_specs=[
                x_spec,
                pl.BlockSpec((H, H), lambda i: (0, 0),
                             memory_space=pltpu.MemorySpace.VMEM),
                pl.BlockSpec((1, H), lambda i: (0, 0),
                             memory_space=pltpu.MemorySpace.VMEM),
            ],
            out_specs=pl.BlockSpec((tm, H), lambda i: (i, 0),
                                   memory_space=pltpu.MemorySpace.VMEM),
        ),
        compiler_params=pltpu.CompilerParams(
            dimension_semantics=("parallel",),
        ),
    )(x_in, w, b2d)


if __name__ == "__main__":
    # Small shapes consistent with the module; H chosen lane-aligned (128) so
    # the fused first-token DMA and unmasked lane-dense stores are exercised.
    B, S, H = 2, 8, 128

    key = jax.random.PRNGKey(0)
    k_x, k_w, k_b = jax.random.split(key, 3)

    hidden_states = jax.random.normal(k_x, (B, S, H), dtype=jnp.float32)
    # Deterministic synthetic parameters for nn.Linear(H, H)
    weight = jax.random.normal(k_w, (H, H), dtype=jnp.float32) * 0.02
    bias = jax.random.normal(k_b, (H,), dtype=jnp.float32) * 0.02

    # Plain-JAX reference.
    ref = jnp.tanh(hidden_states[:, 0, :] @ weight.T + bias)

    # f32 path (matches the PyTorch module's dtype).
    pooler_f32 = jax.jit(bert_pooler)
    out = pooler_f32(hidden_states, weight, bias)
    jax.block_until_ready(out)
    assert out.shape == (B, H)
    # MXU default precision truncates f32 operands to bf16; tolerance covers
    # that while still catching real bugs (wrong contraction ~O(0.1) error).
    assert jnp.allclose(out, ref, atol=2e-3, rtol=2e-3), float(
        jnp.max(jnp.abs(out - ref)))

    # bf16-weight path (halves weight HBM traffic; f32 accumulate + epilogue).
    pooler_bf16 = jax.jit(functools.partial(bert_pooler, use_bf16=True))
    out_bf16 = pooler_bf16(hidden_states, weight, bias)
    jax.block_until_ready(out_bf16)
    assert jnp.allclose(out_bf16, ref, atol=3e-2, rtol=3e-2), float(
        jnp.max(jnp.abs(out_bf16 - ref)))

    print("KERNEL_OK")
</pallas_src>

<mosaic_0001>
module attributes {stable_mosaic.version = 11 : i64} {
  func.func @_pooler_kernel(%arg0: i32, %arg1: memref<2x128xf32, #tpu.memory_space<vmem>>, %arg2: memref<128x128xf32, #tpu.memory_space<vmem>>, %arg3: memref<1x128xf32, #tpu.memory_space<vmem>>, %arg4: memref<2x128xf32, #tpu.memory_space<vmem>>) attributes {dimension_semantics = [#tpu.dimension_semantics<parallel>], iteration_bounds = array<i64: 1>, scalar_prefetch = 0 : i64, scratch_operands = 0 : i64, tpu.core_type = #tpu.core_type<tc>, window_params = [{transform_indices = @transform_0, window_bounds = array<i64: 2, 128>}, {pipeline_mode = #tpu.pipeline_mode<synchronous>, transform_indices = @transform_1, window_bounds = array<i64: 128, 128>}, {pipeline_mode = #tpu.pipeline_mode<synchronous>, transform_indices = @transform_2, window_bounds = array<i64: 1, 128>}, {transform_indices = @transform_3, window_bounds = array<i64: 2, 128>}]} {
    %c0 = arith.constant 0 : index
    %c0_0 = arith.constant 0 : index
    %0 = vector.load %arg1[%c0, %c0_0] : memref<2x128xf32, #tpu.memory_space<vmem>>, vector<2x128xf32>
    %c0_1 = arith.constant 0 : index
    %c0_2 = arith.constant 0 : index
    %1 = vector.load %arg2[%c0_1, %c0_2] : memref<128x128xf32, #tpu.memory_space<vmem>>, vector<128x128xf32>
    %cst = arith.constant dense<0.000000e+00> : vector<2x128xf32>
    %2 = tpu.matmul %0, %1, %cst {dimension_numbers = #tpu.dot_dimension_numbers<[1], [1], [0], [0], [0, 0, 1, 0], [], []>} : vector<2x128xf32>, vector<128x128xf32>, vector<2x128xf32> -> vector<2x128xf32>
    %c0_3 = arith.constant 0 : index
    %c0_4 = arith.constant 0 : index
    %3 = vector.load %arg3[%c0_3, %c0_4] : memref<1x128xf32, #tpu.memory_space<vmem>>, vector<1x128xf32>
    %4 = vector.broadcast %3 : vector<1x128xf32> to vector<2x128xf32>
    %5 = arith.addf %2, %4 : vector<2x128xf32>
    %6 = math.tanh %5 : vector<2x128xf32>
    %c0_5 = arith.constant 0 : index
    %c0_6 = arith.constant 0 : index
    %7 = vector.load %arg4[%c0_5, %c0_6] : memref<2x128xf32, #tpu.memory_space<vmem>>, vector<2x128xf32>
    tpu.vector_store %arg4[%c0_5, %c0_6], %6 {strides = array<i32>} : memref<2x128xf32, #tpu.memory_space<vmem>>, vector<2x128xf32>,
    return
  }
  func.func @transform_0(%arg0: i32) -> (i32, i32) {
    %c0_i32 = arith.constant 0 : i32
    %c0_i32_0 = arith.constant 0 : i32
    return %arg0, %c0_i32 : i32, i32
  }
  func.func @transform_1(%arg0: i32) -> (i32, i32) {
    %c0_i32 = arith.constant 0 : i32
    %c0_i32_0 = arith.constant 0 : i32
    %c0_i32_1 = arith.constant 0 : i32
    return %c0_i32, %c0_i32_0 : i32, i32
  }
  func.func @transform_2(%arg0: i32) -> (i32, i32) {
    %c0_i32 = arith.constant 0 : i32
    %c0_i32_0 = arith.constant 0 : i32
    %c0_i32_1 = arith.constant 0 : i32
    return %c0_i32, %c0_i32_0 : i32, i32
  }
  func.func @transform_3(%arg0: i32) -> (i32, i32) {
    %c0_i32 = arith.constant 0 : i32
    %c0_i32_0 = arith.constant 0 : i32
    return %arg0, %c0_i32 : i32, i32
  }
}

</mosaic_0001>

<llo_original>
// kernel: bert_pooler.1
$region0: #{bert_pooler.1}
  #allocation0 [shape = 'u32[]', space=smem, size = 0x4, offset = 0x4, fixed_abs, tag = 'smem constant byte address 0x4 - core index']
  #allocation1 [shape = 'u32[72,128]{1,0:T(1,128)}', space=vmem, size = 0x9000, scoped, tag = 'internal scratch']
  %s0 = inlined_call_operand.vmem [shape: f32[2,1024], index: 0, kind: input, shape index: {}]
  %s1 = inlined_call_operand.hbm [shape: f32[128,128], index: 1, kind: input, shape index: {}]
  %s2 = inlined_call_operand.vmem [shape: f32[1,128], index: 2, kind: input, shape index: {}]
  %s3 = inlined_call_operand.hbm [shape: f32[2,128], index: 3, kind: output, shape index: {}]
  %s4 = sld [smem:[#allocation0]]
  $region26: #{bert_pooler.1} parent=0
    _
  %s6 = ssub.s32 1, %s4
  %s7 = scalar_select 0, %s6, %s4
  $region1: #{bert_pooler.1} parent=0
    #allocation2 [shape = 'u8[65536]{0}', space=vmem, size = 0x10000, scoped, tag = 'input window, operand 1, single buffered']
    #allocation3 [shape = 's32[1]{0}', space=sflag, size = 0x4, scoped, tag = 'scoped memory for bert_pooler.1']
    #allocation4 [shape = 's32[1]{0}', space=sflag, size = 0x4, scoped, tag = 'scoped memory for bert_pooler.1']
    #allocation5 [shape = 'u8[1024]{0}', space=vmem, size = 0x400, scoped, tag = 'output window, operand 0, single buffered']
    %8 = vsyncpa [#allocation3], 0
    %9 = vsyncpa [#allocation4], 0
    // Predicated region
    $region2: #{bert_pooler.1} parent=1 // pred_check
      _
    $region3: #{bert_pooler.1} parent=1 // pred_check_branch
      %11 = sbr.rel (0) target = $region5
    $region4: #{bert_pooler.1} parent=1 // pred_region
      _
    $region5: #{bert_pooler.1} parent=1 // pred_fallthru
      _
    // Predicated region
    $region6: #{bert_pooler.1} parent=1 // pred_check
      _
    $region7: #{bert_pooler.1} parent=1 // pred_check_branch
      %13 = sbr.rel (0) target = $region9
    $region8: #{bert_pooler.1} parent=1 // pred_region
      %15 = vsyncadd [#allocation3], 0
      %s16 = sshll.u32 %s1, 4
      %s17 = int_to_ptr.hbm [resolvable:$true] %s16
      %s18 = sshll.u32 [#allocation2], 4
      %s19 = int_to_ptr.vmem [resolvable:$true] %s18
      %24 = dma.hbm_to_vmem [thread:$0]  %s17, 2048, %s19, [#allocation3], 128, 128, 8
    $region9: #{bert_pooler.1} parent=1 // pred_fallthru
      _
    // Predicated region
    $region10: #{bert_pooler.1} parent=1 // pred_check
      _
    $region11: #{bert_pooler.1} parent=1 // pred_check_branch
      %26 = sbr.rel (0) target = $region13
    $region12: #{bert_pooler.1} parent=1 // pred_region
      _
    $region13: #{bert_pooler.1} parent=1 // pred_fallthru
      _
    // Predicated region
    $region14: #{bert_pooler.1} parent=1 // pred_check
      _
    $region15: #{bert_pooler.1} parent=1 // pred_check_branch
      %28 = sbr.rel (0) target = $region17
    $region16: #{bert_pooler.1} parent=1 // pred_region
      %30 = dma.done [#allocation3], 2048
    $region17: #{bert_pooler.1} parent=1 // pred_fallthru
      _
    %v31 = vld [vmem:[%s0] sm:$0x3]
    %v32 = vld [vmem:[#allocation2] sm:$0xff]
    %v33 = vld [vmem:[#allocation2 + $0x8] sm:$0xff]
    %v34 = vld [vmem:[#allocation2 + $0x10] sm:$0xff]
    %v35 = vld [vmem:[#allocation2 + $0x18] sm:$0xff]
    %v36 = vld [vmem:[#allocation2 + $0x20] sm:$0xff]
    %v37 = vld [vmem:[#allocation2 + $0x28] sm:$0xff]
    %v38 = vld [vmem:[#allocation2 + $0x30] sm:$0xff]
    %v39 = vld [vmem:[#allocation2 + $0x38] sm:$0xff]
    %v40 = vld [vmem:[#allocation2 + $0x40] sm:$0xff]
    %v41 = vld [vmem:[#allocation2 + $0x48] sm:$0xff]
    %v42 = vld [vmem:[#allocation2 + $0x50] sm:$0xff]
    %v43 = vld [vmem:[#allocation2 + $0x58] sm:$0xff]
    %v44 = vld [vmem:[#allocation2 + $0x60] sm:$0xff]
    %v45 = vld [vmem:[#allocation2 + $0x68] sm:$0xff]
    %v46 = vld [vmem:[#allocation2 + $0x70] sm:$0xff]
    %v47 = vld [vmem:[#allocation2 + $0x78] sm:$0xff]
    %v48 = vld [vmem:[%s2] sm:$0x1]
    %v50 = vperm.slane %v48, 0
    %52 = vmatpush.xpose.msra.mxu0 %v47
    %53 = vmatpush.xpose.msra.mxu0 %v46
    %54 = vmatpush.xpose.msra.mxu0 %v45
    %55 = vmatpush.xpose.msra.mxu0 %v44
    %56 = vmatpush.xpose.msra.mxu0 %v43
    %57 = vmatpush.xpose.msra.mxu0 %v42
    %58 = vmatpush.xpose.msra.mxu0 %v41
    %59 = vmatpush.xpose.msra.mxu0 %v40
    %60 = vmatpush.xpose.msra.mxu0 %v39
    %61 = vmatpush.xpose.msra.mxu0 %v38
    %62 = vmatpush.xpose.msra.mxu0 %v37
    %63 = vmatpush.xpose.msra.mxu0 %v36
    %64 = vmatpush.xpose.msra.mxu0 %v35
    %65 = vmatpush.xpose.msra.mxu0 %v34
    %66 = vmatpush.xpose.msra.mxu0 %v33
    %67 = vmatpush.xpose.msra.mxu0 %v32
    %68 = vmatmul.f32.gmra.mxu0 %v31
    %v69 = vpop.f32.mrf.mxu0
    %v70 = vadd.f32 %v50, %v69
    %71 = vdwg.mxu0
    %v72 = vtanh.pop %v70
    %73 = vst [vmem:[#allocation5] sm:$0x3] %v72
    // Predicated region
    $region18: #{bert_pooler.1} parent=1 // pred_check
      _
    $region19: #{bert_pooler.1} parent=1 // pred_check_branch
      %75 = sbr.rel (0) target = $region21
    $region20: #{bert_pooler.1} parent=1 // pred_region
      %77 = vsyncadd [#allocation4], 0
      %s79 = sshll.u32 [#allocation5], 4
      %s80 = int_to_ptr.vmem [resolvable:$true] %s79
      %s81 = sshll.u32 %s3, 4
      %s82 = int_to_ptr.hbm [resolvable:$true] %s81
      %84 = dma.vmem_to_hbm [thread:$0]  %s80, 32, %s82, [#allocation4]
    $region21: #{bert_pooler.1} parent=1 // pred_fallthru
      _
    // Predicated region
    $region22: #{bert_pooler.1} parent=1 // pred_check
      _
    $region23: #{bert_pooler.1} parent=1 // pred_check_branch
      %86 = sbr.rel (0) target = $region25
    $region24: #{bert_pooler.1} parent=1 // pred_region
      %88 = dma.done [#allocation4], 32
    $region25: #{bert_pooler.1} parent=1 // pred_fallthru
      _
    %89 = vsyncpa [#allocation3], 1
    %90 = vsyncpa [#allocation4], 1

</llo_original>
